<compile_context>
chip_gen: v7x
topology: tpu7x:2x2x1
jax: 0.10.0
libtpu: 0.0.40
codegen_flags: <defaults>
</compile_context>

<pallas_src>
import jax
import jax.numpy as jnp
from jax.experimental import pallas as pl
from jax.experimental.pallas import tpu as pltpu


EMBED_DIM = 32
H1 = 64
H2 = 16

_MAX_TILE = 512   # rows per grid step (multiple of 8 and 128; ~85% of HBM roofline)
_PAD_GRAN = 256   # padding granularity for large batches (caps padded waste at 255 rows)


def _round_up(x, m):
    return (x + m - 1) // m * m


def _choose_tiling(batch):
    """Pick (batch_tile, padded_batch)."""
    bp8 = _round_up(max(batch, 8), 8)
    if bp8 <= _MAX_TILE:
        # Single full-block grid step; full blocks are always layout-legal.
        return bp8, bp8
    bp = _round_up(batch, _PAD_GRAN)
    for bm in (_MAX_TILE, _PAD_GRAN):  # prefer bigger tiles; keep grid >= 2 steps
        if bp % bm == 0 and bp // bm >= 2:
            return bm, bp
    return _PAD_GRAN, bp


def _ncf_mlp_kernel(u_ref, r_ref, w1u_ref, w1r_ref, b1_ref, w2_ref, b2_ref,
                    w3_ref, b3_ref, o_ref):
    """relu(u@W1u + r@W1r + b1) -> relu(@W2 + b2) -> VPU dot with w3 column + b3.

    u_ref/r_ref : (bm, EMBED_DIM) bf16 gathered embedding tiles
    o_ref       : (1, bm) f32 lane-dense output row
    """
    # fc1 on the MXU, split weight => no concatenated (bm, 64) activation needed.
    h1 = (jnp.dot(u_ref[...], w1u_ref[...], preferred_element_type=jnp.float32)
          + jnp.dot(r_ref[...], w1r_ref[...], preferred_element_type=jnp.float32)
          + b1_ref[...])
    h1 = jnp.maximum(h1, 0.0)

    # fc2 on the MXU (bf16 operands, f32 accumulation).
    h2 = jnp.dot(h1.astype(jnp.bfloat16), w2_ref[...],
                 preferred_element_type=jnp.float32) + b2_ref[...]
    h2 = jnp.maximum(h2, 0.0)

    # Final (16 -> 1) layer on VPU/XLU instead of an N=1 MXU matmul:
    # transpose h2 to (16, bm), scale by the w3 column, reduce over the 16
    # sublanes -> lane-dense (1, bm) result (everything stays rank-2).
    logit = jnp.sum(h2.T * w3_ref[...], axis=0, keepdims=True) + b3_ref[...]  # (1, bm)
    o_ref[...] = logit


@jax.jit
def ncf_forward(params, user, recipe):
    """Full NCF forward. user/recipe: int32 (B,). Returns float32 (B,)."""
    # --- glue: embedding gather (pure indexing); cast to bf16 to halve HBM bytes ---
    u = jnp.take(params["user_embed"], user, axis=0).astype(jnp.bfloat16)      # (B, 32)
    r = jnp.take(params["recipe_embed"], recipe, axis=0).astype(jnp.bfloat16)  # (B, 32)

    B = u.shape[0]
    bm, Bp = _choose_tiling(B)
    if Bp != B:
        u = jnp.pad(u, ((0, Bp - B), (0, 0)))
        r = jnp.pad(r, ((0, Bp - B), (0, 0)))

    # Split fc1 weight into the user / recipe halves; matmul operands in bf16.
    w1 = params["w1"]                                   # (64, 64)  [in, out]
    w1u = w1[:EMBED_DIM].astype(jnp.bfloat16)           # (32, 64)
    w1r = w1[EMBED_DIM:].astype(jnp.bfloat16)           # (32, 64)
    b1 = params["b1"].reshape(1, H1)                    # (1, 64) f32
    w2 = params["w2"].astype(jnp.bfloat16)              # (64, 16)
    b2 = params["b2"].reshape(1, H2)                    # (1, 16) f32
    w3 = params["w3"].reshape(H2, 1)                    # (16, 1) f32 (VPU path)
    b3 = params["b3"].reshape(1, 1)                     # (1, 1)  f32

    grid = (Bp // bm,)

    out = pl.pallas_call(
        _ncf_mlp_kernel,
        out_shape=jax.ShapeDtypeStruct((1, Bp), jnp.float32),
        grid_spec=pltpu.PrefetchScalarGridSpec(
            num_scalar_prefetch=0,
            grid=grid,
            in_specs=[
                pl.BlockSpec((bm, EMBED_DIM), lambda i: (i, 0)),   # u tile
                pl.BlockSpec((bm, EMBED_DIM), lambda i: (i, 0)),   # r tile
                pl.BlockSpec((EMBED_DIM, H1), lambda i: (0, 0)),   # W1u
                pl.BlockSpec((EMBED_DIM, H1), lambda i: (0, 0)),   # W1r
                pl.BlockSpec((1, H1), lambda i: (0, 0)),           # b1
                pl.BlockSpec((H1, H2), lambda i: (0, 0)),          # W2
                pl.BlockSpec((1, H2), lambda i: (0, 0)),           # b2
                pl.BlockSpec((H2, 1), lambda i: (0, 0)),           # w3 column
                pl.BlockSpec((1, 1), lambda i: (0, 0)),            # b3
            ],
            # Lane-dense output: one (1, bm) row block per grid step.
            out_specs=pl.BlockSpec((1, bm), lambda i: (0, i)),
        ),
        compiler_params=pltpu.CompilerParams(
            dimension_semantics=("parallel",),
        ),
    )(u, r, w1u, w1r, b1, w2, b2, w3, b3)

    # torch .squeeze(): (B, 1) -> (B,)
    return out[0, :B]


def init_params(key, n_users, n_recipes, embed_dim=EMBED_DIM):
    ks = jax.random.split(key, 8)
    user_embed = jax.random.normal(ks[0], (n_users, embed_dim), jnp.float32)
    recipe_embed = jax.random.normal(ks[1], (n_recipes, embed_dim), jnp.float32)
    w1 = jax.random.normal(ks[2], (embed_dim * 2, H1), jnp.float32) * 0.1
    b1 = jax.random.normal(ks[3], (1, H1), jnp.float32) * 0.1
    w2 = jax.random.normal(ks[4], (H1, H2), jnp.float32) * 0.1
    b2 = jax.random.normal(ks[5], (1, H2), jnp.float32) * 0.1
    w3 = jax.random.normal(ks[6], (H2, 1), jnp.float32) * 0.1
    b3 = jax.random.normal(ks[7], (1, 1), jnp.float32) * 0.1
    return dict(user_embed=user_embed, recipe_embed=recipe_embed,
                w1=w1, b1=b1, w2=w2, b2=b2, w3=w3, b3=b3)


def _reference(params, user, recipe):
    u = jnp.take(params["user_embed"], user, axis=0)
    r = jnp.take(params["recipe_embed"], recipe, axis=0)
    x = jnp.concatenate([u, r], axis=1)
    x = jnp.maximum(x @ params["w1"] + params["b1"], 0.0)
    x = jnp.maximum(x @ params["w2"] + params["b2"], 0.0)
    return (x @ params["w3"] + params["b3"])[:, 0]


if __name__ == "__main__":
    key = jax.random.PRNGKey(0)
    k_param, k_u1, k_r1, k_u2, k_r2 = jax.random.split(key, 5)

    n_users, n_recipes = 64, 128
    params = init_params(k_param, n_users, n_recipes)

    # bf16 matmul operands => loosened tolerance vs the f32 reference.
    ATOL = RTOL = 2e-2

    # Small batch -> single full-block grid step.
    batch_small = 8
    user_s = jax.random.randint(k_u1, (batch_small,), 0, n_users, dtype=jnp.int32)
    rec_s = jax.random.randint(k_r1, (batch_small,), 0, n_recipes, dtype=jnp.int32)
    out_s = jax.block_until_ready(ncf_forward(params, user_s, rec_s))
    ref_s = jax.block_until_ready(_reference(params, user_s, rec_s))
    assert out_s.shape == (batch_small,), out_s.shape
    assert jnp.allclose(out_s, ref_s, atol=ATOL, rtol=RTOL), (out_s, ref_s)

    # Larger batch -> multi-tile (padded, lane-dense, multi-step grid) path.
    batch_big = 600
    user_b = jax.random.randint(k_u2, (batch_big,), 0, n_users, dtype=jnp.int32)
    rec_b = jax.random.randint(k_r2, (batch_big,), 0, n_recipes, dtype=jnp.int32)
    out_b = jax.block_until_ready(ncf_forward(params, user_b, rec_b))
    ref_b = jax.block_until_ready(_reference(params, user_b, rec_b))
    assert out_b.shape == (batch_big,), out_b.shape
    assert jnp.allclose(out_b, ref_b, atol=ATOL, rtol=RTOL), (
        float(jnp.max(jnp.abs(out_b - ref_b))),)

    print("KERNEL_OK")
</pallas_src>

<mosaic_0001>
module attributes {stable_mosaic.version = 11 : i64} {
  func.func @_ncf_mlp_kernel(%arg0: i32, %arg1: memref<8x32xbf16, #tpu.memory_space<vmem>>, %arg2: memref<8x32xbf16, #tpu.memory_space<vmem>>, %arg3: memref<32x64xbf16, #tpu.memory_space<vmem>>, %arg4: memref<32x64xbf16, #tpu.memory_space<vmem>>, %arg5: memref<1x64xf32, #tpu.memory_space<vmem>>, %arg6: memref<64x16xbf16, #tpu.memory_space<vmem>>, %arg7: memref<1x16xf32, #tpu.memory_space<vmem>>, %arg8: memref<16x1xf32, #tpu.memory_space<vmem>>, %arg9: memref<1x1xf32, #tpu.memory_space<vmem>>, %arg10: memref<1x8xf32, #tpu.memory_space<vmem>>) attributes {dimension_semantics = [#tpu.dimension_semantics<parallel>], iteration_bounds = array<i64: 1>, scalar_prefetch = 0 : i64, scratch_operands = 0 : i64, tpu.core_type = #tpu.core_type<tc>, window_params = [{transform_indices = @transform_0, window_bounds = array<i64: 8, 32>}, {transform_indices = @transform_1, window_bounds = array<i64: 8, 32>}, {pipeline_mode = #tpu.pipeline_mode<synchronous>, transform_indices = @transform_2, window_bounds = array<i64: 32, 64>}, {pipeline_mode = #tpu.pipeline_mode<synchronous>, transform_indices = @transform_3, window_bounds = array<i64: 32, 64>}, {pipeline_mode = #tpu.pipeline_mode<synchronous>, transform_indices = @transform_4, window_bounds = array<i64: 1, 64>}, {pipeline_mode = #tpu.pipeline_mode<synchronous>, transform_indices = @transform_5, window_bounds = array<i64: 64, 16>}, {pipeline_mode = #tpu.pipeline_mode<synchronous>, transform_indices = @transform_6, window_bounds = array<i64: 1, 16>}, {pipeline_mode = #tpu.pipeline_mode<synchronous>, transform_indices = @transform_7, window_bounds = array<i64: 16, 1>}, {pipeline_mode = #tpu.pipeline_mode<synchronous>, transform_indices = @transform_8, window_bounds = array<i64: 1, 1>}, {transform_indices = @transform_9, window_bounds = array<i64: 1, 8>}]} {
    %c0 = arith.constant 0 : index
    %c0_0 = arith.constant 0 : index
    %0 = vector.load %arg1[%c0, %c0_0] : memref<8x32xbf16, #tpu.memory_space<vmem>>, vector<8x32xbf16>
    %c0_1 = arith.constant 0 : index
    %c0_2 = arith.constant 0 : index
    %1 = vector.load %arg3[%c0_1, %c0_2] : memref<32x64xbf16, #tpu.memory_space<vmem>>, vector<32x64xbf16>
    %cst = arith.constant dense<0.000000e+00> : vector<8x64xf32>
    %2 = tpu.matmul %0, %1, %cst {dimension_numbers = #tpu.dot_dimension_numbers<[1], [0], [0], [1], [0, 0, 1, 1], [], []>} : vector<8x32xbf16>, vector<32x64xbf16>, vector<8x64xf32> -> vector<8x64xf32>
    %c0_3 = arith.constant 0 : index
    %c0_4 = arith.constant 0 : index
    %3 = vector.load %arg2[%c0_3, %c0_4] : memref<8x32xbf16, #tpu.memory_space<vmem>>, vector<8x32xbf16>
    %c0_5 = arith.constant 0 : index
    %c0_6 = arith.constant 0 : index
    %4 = vector.load %arg4[%c0_5, %c0_6] : memref<32x64xbf16, #tpu.memory_space<vmem>>, vector<32x64xbf16>
    %cst_7 = arith.constant dense<0.000000e+00> : vector<8x64xf32>
    %5 = tpu.matmul %3, %4, %cst_7 {dimension_numbers = #tpu.dot_dimension_numbers<[1], [0], [0], [1], [0, 0, 1, 1], [], []>} : vector<8x32xbf16>, vector<32x64xbf16>, vector<8x64xf32> -> vector<8x64xf32>
    %6 = arith.addf %2, %5 : vector<8x64xf32>
    %c0_8 = arith.constant 0 : index
    %c0_9 = arith.constant 0 : index
    %7 = vector.load %arg5[%c0_8, %c0_9] : memref<1x64xf32, #tpu.memory_space<vmem>>, vector<1x64xf32>
    %8 = vector.broadcast %7 : vector<1x64xf32> to vector<8x64xf32>
    %9 = arith.addf %6, %8 : vector<8x64xf32>
    %cst_10 = arith.constant 0.000000e+00 : f32
    %10 = vector.broadcast %cst_10 : f32 to vector<8x64xf32>
    %11 = arith.maximumf %9, %10 : vector<8x64xf32>
    %12 = arith.truncf %11 : vector<8x64xf32> to vector<8x64xbf16>
    %c0_11 = arith.constant 0 : index
    %c0_12 = arith.constant 0 : index
    %13 = vector.load %arg6[%c0_11, %c0_12] : memref<64x16xbf16, #tpu.memory_space<vmem>>, vector<64x16xbf16>
    %cst_13 = arith.constant dense<0.000000e+00> : vector<8x16xf32>
    %14 = tpu.matmul %12, %13, %cst_13 {dimension_numbers = #tpu.dot_dimension_numbers<[1], [0], [0], [1], [0, 0, 1, 1], [], []>} : vector<8x64xbf16>, vector<64x16xbf16>, vector<8x16xf32> -> vector<8x16xf32>
    %c0_14 = arith.constant 0 : index
    %c0_15 = arith.constant 0 : index
    %15 = vector.load %arg7[%c0_14, %c0_15] : memref<1x16xf32, #tpu.memory_space<vmem>>, vector<1x16xf32>
    %16 = vector.broadcast %15 : vector<1x16xf32> to vector<8x16xf32>
    %17 = arith.addf %14, %16 : vector<8x16xf32>
    %cst_16 = arith.constant 0.000000e+00 : f32
    %18 = vector.broadcast %cst_16 : f32 to vector<8x16xf32>
    %19 = arith.maximumf %17, %18 : vector<8x16xf32>
    %20 = tpu.transpose %19, [1, 0] : vector<8x16xf32> -> vector<16x8xf32>
    %c0_17 = arith.constant 0 : index
    %c0_18 = arith.constant 0 : index
    %21 = vector.load %arg8[%c0_17, %c0_18] : memref<16x1xf32, #tpu.memory_space<vmem>>, vector<16x1xf32>
    %22 = vector.broadcast %21 : vector<16x1xf32> to vector<16x8xf32>
    %23 = arith.mulf %20, %22 : vector<16x8xf32>
    %cst_19 = arith.constant dense<0.000000e+00> : vector<8xf32>
    %24 = vector.multi_reduction <add>, %23, %cst_19 [0] : vector<16x8xf32> to vector<8xf32>
    %25 = vector.shape_cast %24 : vector<8xf32> to vector<1x8xf32>
    %c0_20 = arith.constant 0 : index
    %c0_21 = arith.constant 0 : index
    %26 = vector.load %arg9[%c0_20, %c0_21] : memref<1x1xf32, #tpu.memory_space<vmem>>, vector<1x1xf32>
    %27 = vector.broadcast %26 : vector<1x1xf32> to vector<1x8xf32>
    %28 = arith.addf %25, %27 : vector<1x8xf32>
    %c0_22 = arith.constant 0 : index
    %c0_23 = arith.constant 0 : index
    %29 = vector.load %arg10[%c0_22, %c0_23] : memref<1x8xf32, #tpu.memory_space<vmem>>, vector<1x8xf32>
    tpu.vector_store %arg10[%c0_22, %c0_23], %28 {strides = array<i32>} : memref<1x8xf32, #tpu.memory_space<vmem>>, vector<1x8xf32>,
    return
  }
  func.func @transform_0(%arg0: i32) -> (i32, i32) {
    %c0_i32 = arith.constant 0 : i32
    %c0_i32_0 = arith.constant 0 : i32
    return %arg0, %c0_i32 : i32, i32
  }
  func.func @transform_1(%arg0: i32) -> (i32, i32) {
    %c0_i32 = arith.constant 0 : i32
    %c0_i32_0 = arith.constant 0 : i32
    return %arg0, %c0_i32 : i32, i32
  }
  func.func @transform_2(%arg0: i32) -> (i32, i32) {
    %c0_i32 = arith.constant 0 : i32
    %c0_i32_0 = arith.constant 0 : i32
    %c0_i32_1 = arith.constant 0 : i32
    return %c0_i32, %c0_i32_0 : i32, i32
  }
  func.func @transform_3(%arg0: i32) -> (i32, i32) {
    %c0_i32 = arith.constant 0 : i32
    %c0_i32_0 = arith.constant 0 : i32
    %c0_i32_1 = arith.constant 0 : i32
    return %c0_i32, %c0_i32_0 : i32, i32
  }
  func.func @transform_4(%arg0: i32) -> (i32, i32) {
    %c0_i32 = arith.constant 0 : i32
    %c0_i32_0 = arith.constant 0 : i32
    %c0_i32_1 = arith.constant 0 : i32
    return %c0_i32, %c0_i32_0 : i32, i32
  }
  func.func @transform_5(%arg0: i32) -> (i32, i32) {
    %c0_i32 = arith.constant 0 : i32
    %c0_i32_0 = arith.constant 0 : i32
    %c0_i32_1 = arith.constant 0 : i32
    return %c0_i32, %c0_i32_0 : i32, i32
  }
  func.func @transform_6(%arg0: i32) -> (i32, i32) {
    %c0_i32 = arith.constant 0 : i32
    %c0_i32_0 = arith.constant 0 : i32
    %c0_i32_1 = arith.constant 0 : i32
    return %c0_i32, %c0_i32_0 : i32, i32
  }
  func.func @transform_7(%arg0: i32) -> (i32, i32) {
    %c0_i32 = arith.constant 0 : i32
    %c0_i32_0 = arith.constant 0 : i32
    %c0_i32_1 = arith.constant 0 : i32
    return %c0_i32, %c0_i32_0 : i32, i32
  }
  func.func @transform_8(%arg0: i32) -> (i32, i32) {
    %c0_i32 = arith.constant 0 : i32
    %c0_i32_0 = arith.constant 0 : i32
    %c0_i32_1 = arith.constant 0 : i32
    return %c0_i32, %c0_i32_0 : i32, i32
  }
  func.func @transform_9(%arg0: i32) -> (i32, i32) {
    %c0_i32 = arith.constant 0 : i32
    %c0_i32_0 = arith.constant 0 : i32
    return %c0_i32, %arg0 : i32, i32
  }
}

</mosaic_0001>

<llo_original>
// kernel: ncf_forward.1
$region0: #{ncf_forward.1}
  #allocation0 [shape = 'u32[]', space=smem, size = 0x4, offset = 0x4, fixed_abs, tag = 'smem constant byte address 0x4 - core index']
  #allocation1 [shape = 'u32[144,128]{1,0:T(1,128)}', space=vmem, size = 0x12000, scoped, tag = 'internal scratch']
  #allocation2 [shape = 'f32[1,1]{1,0:T(1,128)S(1)}', space=vmem, size = 0x200, scoped, tag = 'scoped memory for ncf_forward.1']
  %s0 = inlined_call_operand.vmem [shape: bf16[8,32], index: 0, kind: input, shape index: {}]
  %s1 = inlined_call_operand.vmem [shape: bf16[8,32], index: 1, kind: input, shape index: {}]
  %s2 = inlined_call_operand.vmem [shape: bf16[32,64], index: 2, kind: input, shape index: {}]
  %s3 = inlined_call_operand.vmem [shape: bf16[32,64], index: 3, kind: input, shape index: {}]
  %s4 = inlined_call_operand.vmem [shape: f32[1,64], index: 4, kind: input, shape index: {}]
  %s5 = inlined_call_operand.vmem [shape: bf16[64,16], index: 5, kind: input, shape index: {}]
  %s6 = inlined_call_operand.vmem [shape: f32[1,16], index: 6, kind: input, shape index: {}]
  %s7 = inlined_call_operand.vmem [shape: f32[16,1], index: 7, kind: input, shape index: {}]
  %s8 = inlined_call_operand.<no memory space> [shape: f32[1,1], index: 8, kind: input, shape index: {}]
  %s9 = inlined_call_operand.hbm [shape: f32[1,8], index: 9, kind: output, shape index: {}]
  %s10 = sld [smem:[#allocation0]]
  $region46: #{ncf_forward.1} parent=0
    _
  %s12 = ssub.s32 1, %s10
  %s13 = scalar_select 0, %s12, %s10
  %v14 = vstv %s8
  %15 = vst [vmem:[#allocation2] sm:$0x1] %v14
  $region1: #{ncf_forward.1} parent=0
    #allocation3 [shape = 'u8[512]{0}', space=vmem, size = 0x400, scoped, tag = 'output window, operand 0, single buffered']
    #allocation4 [shape = 's32[1]{0}', space=sflag, size = 0x4, scoped, tag = 'scoped memory for ncf_forward.1']
    %16 = vsyncpa [#allocation4], 0
    // Predicated region
    $region2: #{ncf_forward.1} parent=1 // pred_check
      _
    $region3: #{ncf_forward.1} parent=1 // pred_check_branch
      %18 = sbr.rel (0) target = $region5
    $region4: #{ncf_forward.1} parent=1 // pred_region
      _
    $region5: #{ncf_forward.1} parent=1 // pred_fallthru
      _
    // Predicated region
    $region6: #{ncf_forward.1} parent=1 // pred_check
      _
    $region7: #{ncf_forward.1} parent=1 // pred_check_branch
      %20 = sbr.rel (0) target = $region9
    $region8: #{ncf_forward.1} parent=1 // pred_region
      _
    $region9: #{ncf_forward.1} parent=1 // pred_fallthru
      _
    // Predicated region
    $region10: #{ncf_forward.1} parent=1 // pred_check
      _
    $region11: #{ncf_forward.1} parent=1 // pred_check_branch
      %22 = sbr.rel (0) target = $region13
    $region12: #{ncf_forward.1} parent=1 // pred_region
      _
    $region13: #{ncf_forward.1} parent=1 // pred_fallthru
      _
    // Predicated region
    $region14: #{ncf_forward.1} parent=1 // pred_check
      _
    $region15: #{ncf_forward.1} parent=1 // pred_check_branch
      %24 = sbr.rel (0) target = $region17
    $region16: #{ncf_forward.1} parent=1 // pred_region
      _
    $region17: #{ncf_forward.1} parent=1 // pred_fallthru
      _
    // Predicated region
    $region18: #{ncf_forward.1} parent=1 // pred_check
      _
    $region19: #{ncf_forward.1} parent=1 // pred_check_branch
      %26 = sbr.rel (0) target = $region21
    $region20: #{ncf_forward.1} parent=1 // pred_region
      _
    $region21: #{ncf_forward.1} parent=1 // pred_fallthru
      _
    // Predicated region
    $region22: #{ncf_forward.1} parent=1 // pred_check
      _
    $region23: #{ncf_forward.1} parent=1 // pred_check_branch
      %28 = sbr.rel (0) target = $region25
    $region24: #{ncf_forward.1} parent=1 // pred_region
      _
    $region25: #{ncf_forward.1} parent=1 // pred_fallthru
      _
    // Predicated region
    $region26: #{ncf_forward.1} parent=1 // pred_check
      _
    $region27: #{ncf_forward.1} parent=1 // pred_check_branch
      %30 = sbr.rel (0) target = $region29
    $region28: #{ncf_forward.1} parent=1 // pred_region
      _
    $region29: #{ncf_forward.1} parent=1 // pred_fallthru
      _
    // Predicated region
    $region30: #{ncf_forward.1} parent=1 // pred_check
      _
    $region31: #{ncf_forward.1} parent=1 // pred_check_branch
      %32 = sbr.rel (0) target = $region33
    $region32: #{ncf_forward.1} parent=1 // pred_region
      _
    $region33: #{ncf_forward.1} parent=1 // pred_fallthru
      _
    // Predicated region
    $region34: #{ncf_forward.1} parent=1 // pred_check
      _
    $region35: #{ncf_forward.1} parent=1 // pred_check_branch
      %34 = sbr.rel (0) target = $region37
    $region36: #{ncf_forward.1} parent=1 // pred_region
      _
    $region37: #{ncf_forward.1} parent=1 // pred_fallthru
      _
    %v36 = vld [vmem:[%s0] sm:$0xf]
    %v37 = vld [vmem:[%s2] sm:$0xf]
    %v38 = vld [vmem:[%s2 + $0x4] sm:$0xf]
    %v39 = vld [vmem:[%s2 + $0x8] sm:$0xf]
    %v40 = vld [vmem:[%s2 + $0xc] sm:$0xf]
    %v41 = vld [vmem:[%s1] sm:$0xf]
    %v42 = vld [vmem:[%s3] sm:$0xf]
    %v43 = vld [vmem:[%s3 + $0x4] sm:$0xf]
    %v44 = vld [vmem:[%s3 + $0x8] sm:$0xf]
    %v45 = vld [vmem:[%s3 + $0xc] sm:$0xf]
    %v50 = vunpack.c.l.b16 %v42
    %v51 = vunpack.c.l.b16 %v43
    %v52 = vunpack.c.l.b16 %v44
    %v53 = vunpack.c.l.b16 %v45
    %v54 = vpack.c.b16 %v51, %v50
    %v55 = vpack.c.b16 %v53, %v52
    %vm58 = vcmask 261120
    %v60 = vsel %vm58, %v41, 0
    %62 = vmatprep.subr.bf16.mxu0 0
    %63 = vmatpush1.bf16.msra.mxu0 %v54
    %64 = vmatprep.subr.bf16.mxu0 0
    %65 = vmatpush1.bf16.msra.mxu0 %v55
    %66 = vmatprep.subr.bf16.mxu0 0
    %67 = vmatpush1.bf16.msra.mxu0 0
    %68 = vmatprep.subr.bf16.mxu0 0
    %69 = vmatpush1.bf16.msra.mxu0 0
    %70 = vmatprep.subr.bf16.mxu0 0
    %71 = vmatpush1.bf16.msra.mxu0 0
    %72 = vmatprep.subr.bf16.mxu0 0
    %73 = vmatpush1.bf16.msra.mxu0 0
    %74 = vmatprep.subr.bf16.mxu0 0
    %75 = vmatpush1.bf16.msra.mxu0 0
    %76 = vmatprep.subr.bf16.mxu0 0
    %77 = vmatpush1.bf16.msra.mxu0 0
    %78 = vmatprep.subr.bf16.mxu0 0
    %79 = vmatpush1.bf16.msra.mxu0 0
    %80 = vmatprep.subr.bf16.mxu0 0
    %81 = vmatpush1.bf16.msra.mxu0 0
    %82 = vmatprep.subr.bf16.mxu0 0
    %83 = vmatpush1.bf16.msra.mxu0 0
    %84 = vmatprep.subr.bf16.mxu0 0
    %85 = vmatpush1.bf16.msra.mxu0 0
    %86 = vmatprep.subr.bf16.mxu0 0
    %87 = vmatpush1.bf16.msra.mxu0 0
    %88 = vmatprep.subr.bf16.mxu0 0
    %89 = vmatpush1.bf16.msra.mxu0 0
    %90 = vmatprep.subr.bf16.mxu0 0
    %91 = vmatpush1.bf16.msra.mxu0 0
    %92 = vmatprep.subr.bf16.mxu0 0
    %93 = vmatpush1.bf16.msra.mxu0 0
    %94 = vmatprep.mubr.bf16.mxu0 0
    %95 = vmatmul.mubr.bf16.gmra.mrb[0].mxu0 %v60
    %v96 = vpop.f32.mrb[0].mxu0
    %v97 = vadd.f32 0.0, %v96
    %v98 = vpop.f32.mrb[0].mxu0
    %v99 = vpop.f32.mrb[0].mxu0
    %v100 = vpop.f32.mrb[0].mxu0
    %101 = vdwg.mxu0
    %v106 = vunpack.c.l.b16 %v37
    %v107 = vunpack.c.l.b16 %v38
    %v108 = vunpack.c.l.b16 %v39
    %v109 = vunpack.c.l.b16 %v40
    %v110 = vpack.c.b16 %v107, %v106
    %v111 = vpack.c.b16 %v109, %v108
    %v115 = vsel %vm58, %v36, 0
    %117 = vmatprep.subr.bf16.mxu0 0
    %118 = vmatpush1.bf16.msra.mxu0 %v110
    %119 = vmatprep.subr.bf16.mxu0 0
    %120 = vmatpush1.bf16.msra.mxu0 %v111
    %121 = vmatprep.subr.bf16.mxu0 0
    %122 = vmatpush1.bf16.msra.mxu0 0
    %123 = vmatprep.subr.bf16.mxu0 0
    %124 = vmatpush1.bf16.msra.mxu0 0
    %125 = vmatprep.subr.bf16.mxu0 0
    %126 = vmatpush1.bf16.msra.mxu0 0
    %127 = vmatprep.subr.bf16.mxu0 0
    %128 = vmatpush1.bf16.msra.mxu0 0
    %129 = vmatprep.subr.bf16.mxu0 0
    %130 = vmatpush1.bf16.msra.mxu0 0
    %131 = vmatprep.subr.bf16.mxu0 0
    %132 = vmatpush1.bf16.msra.mxu0 0
    %133 = vmatprep.subr.bf16.mxu0 0
    %134 = vmatpush1.bf16.msra.mxu0 0
    %135 = vmatprep.subr.bf16.mxu0 0
    %136 = vmatpush1.bf16.msra.mxu0 0
    %137 = vmatprep.subr.bf16.mxu0 0
    %138 = vmatpush1.bf16.msra.mxu0 0
    %139 = vmatprep.subr.bf16.mxu0 0
    %140 = vmatpush1.bf16.msra.mxu0 0
    %141 = vmatprep.subr.bf16.mxu0 0
    %142 = vmatpush1.bf16.msra.mxu0 0
    %143 = vmatprep.subr.bf16.mxu0 0
    %144 = vmatpush1.bf16.msra.mxu0 0
    %145 = vmatprep.subr.bf16.mxu0 0
    %146 = vmatpush1.bf16.msra.mxu0 0
    %147 = vmatprep.subr.bf16.mxu0 0
    %148 = vmatpush1.bf16.msra.mxu0 0
    %149 = vmatprep.mubr.bf16.mxu0 0
    %150 = vmatmul.mubr.bf16.gmra.mrb[0].mxu0 %v115
    %v151 = vpop.f32.mrb[0].mxu0
    %v152 = vadd.f32 %v97, %v151
    %v153 = vpop.f32.mrb[0].mxu0
    %v154 = vpop.f32.mrb[0].mxu0
    %v155 = vpop.f32.mrb[0].mxu0
    %156 = vdwg.mxu0
    %v157 = vld [vmem:[%s4] sm:$0x1]
    %v159 = vlaneseq
    %v160 = vshrl.u32 %v159, 7
    %v161 = vsub.s32 0, %v160
    %v162 = vrot.slane %v157, %v161
    %v164 = vadd.f32 %v152, %v162
    %v165 = vmax.f32 %v164, 0.0
    %v166 = vpack.c.bf16 %v165, %v165
    %v167 = vld [vmem:[%s5] sm:$0xf]
    %v168 = vld [vmem:[%s5 + $0x4] sm:$0xf]
    %v169 = vld [vmem:[%s5 + $0x8] sm:$0xf]
    %v170 = vld [vmem:[%s5 + $0xc] sm:$0xf]
    %v171 = vld [vmem:[%s5 + $0x10] sm:$0xf]
    %v172 = vld [vmem:[%s5 + $0x14] sm:$0xf]
    %v173 = vld [vmem:[%s5 + $0x18] sm:$0xf]
    %v174 = vld [vmem:[%s5 + $0x1c] sm:$0xf]
    %v175 = vld [vmem:[%s6] sm:$0x1]
    %v177 = vlaneseq
    %v178 = vshrl.u32 %v177, 7
    %v179 = vsub.s32 0, %v178
    %v180 = vrot.slane %v175, %v179
    %v190 = vunpack.c.l.b16 %v167
    %v191 = vunpack.c.l.b16 %v168
    %v192 = vunpack.c.l.b16 %v169
    %v193 = vunpack.c.l.b16 %v170
    %v194 = vunpack.c.l.b16 %v171
    %v195 = vunpack.c.l.b16 %v172
    %v196 = vunpack.c.l.b16 %v173
    %v197 = vunpack.c.l.b16 %v174
    %v198 = vpack.c.b16 %v191, %v190
    %v199 = vpack.c.b16 %v193, %v192
    %v200 = vpack.c.b16 %v195, %v194
    %v201 = vpack.c.b16 %v197, %v196
    %vm206 = vcmask 523264
    %v208 = vsel %vm206, %v166, 0
    %210 = vmatprep.subr.bf16.mxu0 0
    %211 = vmatpush1.bf16.msra.mxu0 %v198
    %212 = vmatprep.subr.bf16.mxu0 0
    %213 = vmatpush1.bf16.msra.mxu0 %v199
    %214 = vmatprep.subr.bf16.mxu0 0
    %215 = vmatpush1.bf16.msra.mxu0 %v200
    %216 = vmatprep.subr.bf16.mxu0 0
    %217 = vmatpush1.bf16.msra.mxu0 %v201
    %218 = vmatprep.subr.bf16.mxu0 0
    %219 = vmatpush1.bf16.msra.mxu0 0
    %220 = vmatprep.subr.bf16.mxu0 0
    %221 = vmatpush1.bf16.msra.mxu0 0
    %222 = vmatprep.subr.bf16.mxu0 0
    %223 = vmatpush1.bf16.msra.mxu0 0
    %224 = vmatprep.subr.bf16.mxu0 0
    %225 = vmatpush1.bf16.msra.mxu0 0
    %226 = vmatprep.subr.bf16.mxu0 0
    %227 = vmatpush1.bf16.msra.mxu0 0
    %228 = vmatprep.subr.bf16.mxu0 0
    %229 = vmatpush1.bf16.msra.mxu0 0
    %230 = vmatprep.subr.bf16.mxu0 0
    %231 = vmatpush1.bf16.msra.mxu0 0
    %232 = vmatprep.subr.bf16.mxu0 0
    %233 = vmatpush1.bf16.msra.mxu0 0
    %234 = vmatprep.subr.bf16.mxu0 0
    %235 = vmatpush1.bf16.msra.mxu0 0
    %236 = vmatprep.subr.bf16.mxu0 0
    %237 = vmatpush1.bf16.msra.mxu0 0
    %238 = vmatprep.subr.bf16.mxu0 0
    %239 = vmatpush1.bf16.msra.mxu0 0
    %240 = vmatprep.subr.bf16.mxu0 0
    %241 = vmatpush1.bf16.msra.mxu0 0
    %242 = vmatprep.mubr.bf16.mxu0 0
    %243 = vmatmul.mubr.bf16.gmra.mrb[0].mxu0 %v208
    %v244 = vpop.f32.mrb[0].mxu0
    %v245 = vadd.f32 %v180, %v244
    %v246 = vpop.f32.mrb[0].mxu0
    %v247 = vpop.f32.mrb[0].mxu0
    %v248 = vpop.f32.mrb[0].mxu0
    %249 = vdwg.mxu0
    %v250 = vmax.f32 %v245, 0.0
    %251 = vxpose.xlu0.b32.start [1/16] %v250, 128
    %252 = vxpose.xlu0.b32.cont [2/16] 0.0, 128
    %253 = vxpose.xlu0.b32.cont [3/16] 0.0, 128
    %254 = vxpose.xlu0.b32.cont [4/16] 0.0, 128
    %255 = vxpose.xlu0.b32.cont [5/16] 0.0, 128
    %256 = vxpose.xlu0.b32.cont [6/16] 0.0, 128
    %257 = vxpose.xlu0.b32.cont [7/16] 0.0, 128
    %258 = vxpose.xlu0.b32.cont [8/16] 0.0, 128
    %259 = vxpose.xlu0.b32.cont [9/16] 0.0, 128
    %260 = vxpose.xlu0.b32.cont [10/16] 0.0, 128
    %261 = vxpose.xlu0.b32.cont [11/16] 0.0, 128
    %262 = vxpose.xlu0.b32.cont [12/16] 0.0, 128
    %263 = vxpose.xlu0.b32.cont [13/16] 0.0, 128
    %264 = vxpose.xlu0.b32.cont [14/16] 0.0, 128
    %265 = vxpose.xlu0.b32.cont [15/16] 0.0, 128
    %266 = vxpose.xlu0.b32.end [16/16] 0.0, 128
    %v267 = vpop.trf.xlu0
    %v268 = vpop.trf.xlu0
    %v269 = vpop.trf.xlu0
    %v270 = vpop.trf.xlu0
    %v271 = vpop.trf.xlu0
    %v272 = vpop.trf.xlu0
    %v273 = vpop.trf.xlu0
    %v274 = vpop.trf.xlu0
    %v275 = vpop.trf.xlu0
    %v276 = vpop.trf.xlu0
    %v277 = vpop.trf.xlu0
    %v278 = vpop.trf.xlu0
    %v279 = vpop.trf.xlu0
    %v280 = vpop.trf.xlu0
    %v281 = vpop.trf.xlu0
    %v282 = vpop.trf.xlu0
    %v283 = vld [vmem:[%s7] sm:$0xff]
    %v284 = vld [vmem:[%s7 + $0x8] sm:$0xff]
    %286 = vset.pattern.permute.xlu0 0
    %287 = vperm.xlu0 %286, %v283
    %v288 = vpop.permute.xlu0 %287
    %291 = vset.pattern.permute.xlu0 0
    %292 = vperm.xlu0 %291, %v284
    %v293 = vpop.permute.xlu0 %292
    %v295 = vmul.f32 %v267, %v288
    %v296 = vmul.f32 %v268, %v293
    %vm297 = vcmask 64512
    %v298 = vsel %vm297, %v295, 0.0
    %v299 = vsel %vm297, %v296, 0.0
    %v300 = vadd.f32 %v298, %v299
    %v301 = vrot.slane %v300, 4
    %v302 = vadd.f32 %v300, %v301
    %v303 = vrot.slane %v302, 2
    %v304 = vadd.f32 %v302, %v303
    %v305 = vrot.slane %v304, 1
    %v306 = vadd.f32 %v304, %v305
    %v307 = vld [vmem:[#allocation2] sm:$0x1]
    %309 = vset.pattern.permute.xlu0 0
    %310 = vperm.xlu0 %309, %v307
    %v311 = vpop.permute.xlu0 %310
    %v313 = vlaneseq
    %v314 = vshrl.u32 %v313, 7
    %v315 = vsub.s32 0, %v314
    %v316 = vrot.slane %v311, %v315
    %v317 = vadd.f32 %v306, %v316
    %vm318 = vcmask 57344
    %319 = vst.msk [vmem:[#allocation3] sm:$0x1] %vm318, %v317
    // Predicated region
    $region38: #{ncf_forward.1} parent=1 // pred_check
      _
    $region39: #{ncf_forward.1} parent=1 // pred_check_branch
      %321 = sbr.rel (0) target = $region41
    $region40: #{ncf_forward.1} parent=1 // pred_region
      %s323 = ssub.s32 16, 16
      %324 = vsyncadd [#allocation4], %s323
      %s326 = sshll.u32 [#allocation3], 4
      %s327 = int_to_ptr.vmem [resolvable:$true] %s326
      %329 = dma.vmem_to_hbm [thread:$0]  %s327, 16, %s9, [#allocation4]
    $region41: #{ncf_forward.1} parent=1 // pred_fallthru
      _
    // Predicated region
    $region42: #{ncf_forward.1} parent=1 // pred_check
      _
    $region43: #{ncf_forward.1} parent=1 // pred_check_branch
      %331 = sbr.rel (0) target = $region45
    $region44: #{ncf_forward.1} parent=1 // pred_region
      %332 = dma.done [#allocation4], 16
    $region45: #{ncf_forward.1} parent=1 // pred_fallthru
      _
    %333 = vsyncpa [#allocation4], 1

</llo_original>
